<compile_context>
chip_gen: v7x
topology: tpu7x:2x2x1
jax: 0.10.0
libtpu: 0.0.40
codegen_flags: <defaults>
</compile_context>

<pallas_src>
import functools

import jax
import jax.numpy as jnp
from jax.experimental import pallas as pl
from jax.experimental.pallas import tpu as pltpu


def _cdiv(a, b):
    return (a + b - 1) // b


def _round_up(n, m):
    return ((n + m - 1) // m) * m


def _pick_pack(din, h, dout, max_weight_bytes=4 << 20):
    """Batch rows packed per lane-row so the narrow feature dims become lane-dense (>=128)."""
    if din >= 128 and dout >= 128:
        return 1
    p = 1
    for cand in (2, 4, 8, 16):
        w_bytes = (din * h + h * dout) * cand * cand * 2  # bf16 block-diag weights
        if w_bytes > max_weight_bytes:
            break
        p = cand
        if din * cand >= 128 and dout * cand >= 128:
            break
    return p


def mlp_kernel(x_ref, w1_ref, b1_ref, w2_ref, b2_ref, o_ref):
    # x arrives f32; cast to bf16 on the VPU (hidden under the tile DMA).
    x = x_ref[...].astype(jnp.bfloat16)
    # fc1 on the MXU, f32 accumulation, bias add in f32.
    h = jnp.dot(x, w1_ref[...], preferred_element_type=jnp.float32)
    h = h + b1_ref[...]
    # ELU (alpha=1): x if x > 0 else exp(x) - 1 (arg clamped so the unused branch can't overflow).
    h = jnp.where(h > 0.0, h, jnp.exp(jnp.minimum(h, 0.0)) - 1.0)
    # dropout(p=0.1) -> identity in eval mode.
    # fc2 on the MXU.
    out = jnp.dot(h.astype(jnp.bfloat16), w2_ref[...], preferred_element_type=jnp.float32)
    out = out + b2_ref[...]
    o_ref[...] = out.astype(o_ref.dtype)


@functools.partial(jax.jit, static_argnames=("block_rows",))
def mlp_forward(x, w1, b1, w2, b2, *, block_rows=1024):
    """x: (B, Din); w1: (Din, H); b1: (H,); w2: (H, Dout); b2: (Dout,)."""
    B, Din = x.shape
    H = w1.shape[1]
    Dout = w2.shape[1]
    out_dtype = x.dtype

    # Batch-pack P rows per lane-row: x (B, Din) -> (B/P, Din*P); weights become block-diagonal.
    P = _pick_pack(Din, H, Dout)
    DinP, HP, DoutP = Din * P, H * P, Dout * P

    packed_rows = _cdiv(B, P)
    rows8 = _round_up(packed_rows, 8)
    # Balance tiles (small padding for non-aligned B) and keep >= 2 grid steps when possible so
    # v7x's 2 TensorCores can shard the batch axis (negligible cost on single-TC v5e/v6e).
    n_tiles = max(_cdiv(rows8, block_rows), 2 if rows8 >= 16 else 1)
    TB = _round_up(_cdiv(rows8, n_tiles), 8)
    bp_packed = n_tiles * TB
    bp_rows = bp_packed * P

    if bp_rows != B:
        x = jnp.pad(x, ((0, bp_rows - B), (0, 0)))
    x_packed = x.reshape(bp_packed, DinP)  # pure row-major layout plumbing, f32

    # One-time block-diagonal packed weights (tiny), bf16 for the MXU; biases tiled, f32.
    eye = jnp.eye(P, dtype=jnp.bfloat16)
    w1_blk = jnp.kron(eye, w1.astype(jnp.bfloat16))  # (DinP, HP)
    w2_blk = jnp.kron(eye, w2.astype(jnp.bfloat16))  # (HP, DoutP)
    b1_t = jnp.tile(b1.reshape(1, H).astype(jnp.float32), (1, P))      # (1, HP)
    b2_t = jnp.tile(b2.reshape(1, Dout).astype(jnp.float32), (1, P))   # (1, DoutP)

    # VMEM budget: resident weights/biases + double-buffered f32 x/out tiles + intermediates.
    vmem_est = (
        2 * (DinP * HP + HP * DoutP) * 2      # bf16 block weights (x2 buffering headroom)
        + 2 * (HP + DoutP) * 4                # f32 biases
        + 2 * TB * DinP * 4                   # double-buffered f32 x tiles
        + 2 * TB * DoutP * 4                  # double-buffered f32 out tiles
        + TB * HP * 4                         # f32 intermediate
        + TB * HP * 2 + TB * DinP * 2         # bf16 casts
    )
    vmem_limit = int(min(max(8 << 20, 2 * vmem_est), 32 << 20))

    out_packed = pl.pallas_call(
        mlp_kernel,
        out_shape=jax.ShapeDtypeStruct((bp_packed, DoutP), out_dtype),
        grid_spec=pl.GridSpec(
            grid=(n_tiles,),
            in_specs=[
                pl.BlockSpec((TB, DinP), lambda i: (i, 0)),    # x tiles: pipelined over batch
                pl.BlockSpec((DinP, HP), lambda i: (0, 0)),    # w1 block-diag: VMEM-resident
                pl.BlockSpec((1, HP), lambda i: (0, 0)),       # b1
                pl.BlockSpec((HP, DoutP), lambda i: (0, 0)),   # w2 block-diag: VMEM-resident
                pl.BlockSpec((1, DoutP), lambda i: (0, 0)),    # b2
            ],
            out_specs=pl.BlockSpec((TB, DoutP), lambda i: (i, 0)),  # lane-dense (128) stores
        ),
        compiler_params=pltpu.CompilerParams(
            dimension_semantics=("parallel",),  # batch tiles independent -> v7x megacore shard
            vmem_limit_bytes=vmem_limit,
        ),
    )(x_packed, w1_blk, b1_t, w2_blk, b2_t)

    out = out_packed.reshape(bp_rows, Dout)
    return out[:B] if bp_rows != B else out


def reference_mlp(x, w1, b1, w2, b2):
    # Same numerics as the kernel: bf16 matmul operands, f32 accumulation/activation.
    xb = x.astype(jnp.bfloat16)
    h = jnp.dot(xb, w1.astype(jnp.bfloat16),
                preferred_element_type=jnp.float32) + b1.reshape(1, -1)
    h = jnp.where(h > 0.0, h, jnp.exp(jnp.minimum(h, 0.0)) - 1.0)
    out = jnp.dot(h.astype(jnp.bfloat16), w2.astype(jnp.bfloat16),
                  preferred_element_type=jnp.float32) + b2.reshape(1, -1)
    return out.astype(x.dtype)


if __name__ == "__main__":
    # Small shapes consistent with the module: input_dim=32, hidden_dim=64, output_dim=32, batch=8.
    B, Din, H, Dout = 8, 32, 64, 32

    key = jax.random.PRNGKey(0)
    kx, k1, kb1, k2, kb2 = jax.random.split(key, 5)

    x = jax.random.normal(kx, (B, Din), dtype=jnp.float32)
    # Torch Linear weight is (out, in) -> stored pre-transposed as (in, out) here.
    w1 = jax.random.normal(k1, (Din, H), dtype=jnp.float32) * 0.05
    b1 = jax.random.normal(kb1, (H,), dtype=jnp.float32) * 0.01
    w2 = jax.random.normal(k2, (H, Dout), dtype=jnp.float32) * 0.05
    b2 = jax.random.normal(kb2, (Dout,), dtype=jnp.float32) * 0.01

    out = jax.block_until_ready(mlp_forward(x, w1, b1, w2, b2))
    ref = reference_mlp(x, w1, b1, w2, b2)
    assert out.shape == (B, Dout)
    assert jnp.allclose(out, ref, atol=2e-3, rtol=2e-3), "mismatch vs reference"

    # Non-aligned, multi-tile batch: exercises tile balancing + padding + pipelining path.
    B2 = 300
    x2 = jax.random.normal(kx, (B2, Din), dtype=jnp.float32)
    out2 = jax.block_until_ready(mlp_forward(x2, w1, b1, w2, b2))
    ref2 = reference_mlp(x2, w1, b1, w2, b2)
    assert out2.shape == (B2, Dout)
    assert jnp.allclose(out2, ref2, atol=2e-3, rtol=2e-3), "mismatch vs reference (B=300)"

    print("KERNEL_OK")
</pallas_src>

<mosaic_0001>
module attributes {stable_mosaic.version = 11 : i64} {
  func.func @mlp_kernel(%arg0: i32, %arg1: memref<8x128xf32, #tpu.memory_space<vmem>>, %arg2: memref<128x256xbf16, #tpu.memory_space<vmem>>, %arg3: memref<1x256xf32, #tpu.memory_space<vmem>>, %arg4: memref<256x128xbf16, #tpu.memory_space<vmem>>, %arg5: memref<1x128xf32, #tpu.memory_space<vmem>>, %arg6: memref<8x128xf32, #tpu.memory_space<vmem>>) attributes {dimension_semantics = [#tpu.dimension_semantics<parallel>], iteration_bounds = array<i64: 1>, scalar_prefetch = 0 : i64, scratch_operands = 0 : i64, tpu.core_type = #tpu.core_type<tc>, window_params = [{transform_indices = @transform_0, window_bounds = array<i64: 8, 128>}, {pipeline_mode = #tpu.pipeline_mode<synchronous>, transform_indices = @transform_1, window_bounds = array<i64: 128, 256>}, {pipeline_mode = #tpu.pipeline_mode<synchronous>, transform_indices = @transform_2, window_bounds = array<i64: 1, 256>}, {pipeline_mode = #tpu.pipeline_mode<synchronous>, transform_indices = @transform_3, window_bounds = array<i64: 256, 128>}, {pipeline_mode = #tpu.pipeline_mode<synchronous>, transform_indices = @transform_4, window_bounds = array<i64: 1, 128>}, {transform_indices = @transform_5, window_bounds = array<i64: 8, 128>}]} {
    %c0 = arith.constant 0 : index
    %c0_0 = arith.constant 0 : index
    %0 = vector.load %arg1[%c0, %c0_0] : memref<8x128xf32, #tpu.memory_space<vmem>>, vector<8x128xf32>
    %1 = arith.truncf %0 : vector<8x128xf32> to vector<8x128xbf16>
    %c0_1 = arith.constant 0 : index
    %c0_2 = arith.constant 0 : index
    %2 = vector.load %arg2[%c0_1, %c0_2] : memref<128x256xbf16, #tpu.memory_space<vmem>>, vector<128x256xbf16>
    %cst = arith.constant dense<0.000000e+00> : vector<8x256xf32>
    %3 = tpu.matmul %1, %2, %cst {dimension_numbers = #tpu.dot_dimension_numbers<[1], [0], [0], [1], [0, 0, 1, 1], [], []>} : vector<8x128xbf16>, vector<128x256xbf16>, vector<8x256xf32> -> vector<8x256xf32>
    %c0_3 = arith.constant 0 : index
    %c0_4 = arith.constant 0 : index
    %4 = vector.load %arg3[%c0_3, %c0_4] : memref<1x256xf32, #tpu.memory_space<vmem>>, vector<1x256xf32>
    %5 = vector.broadcast %4 : vector<1x256xf32> to vector<8x256xf32>
    %6 = arith.addf %3, %5 : vector<8x256xf32>
    %cst_5 = arith.constant 0.000000e+00 : f32
    %7 = vector.broadcast %cst_5 : f32 to vector<8x256xf32>
    %8 = arith.cmpf ogt, %6, %7 : vector<8x256xf32>
    %cst_6 = arith.constant 0.000000e+00 : f32
    %9 = vector.broadcast %cst_6 : f32 to vector<8x256xf32>
    %10 = arith.minimumf %6, %9 : vector<8x256xf32>
    %11 = math.exp %10 : vector<8x256xf32>
    %cst_7 = arith.constant 1.000000e+00 : f32
    %12 = vector.broadcast %cst_7 : f32 to vector<8x256xf32>
    %13 = arith.subf %11, %12 : vector<8x256xf32>
    %14 = arith.select %8, %6, %13 : vector<8x256xi1>, vector<8x256xf32>
    %15 = arith.truncf %14 : vector<8x256xf32> to vector<8x256xbf16>
    %c0_8 = arith.constant 0 : index
    %c0_9 = arith.constant 0 : index
    %16 = vector.load %arg4[%c0_8, %c0_9] : memref<256x128xbf16, #tpu.memory_space<vmem>>, vector<256x128xbf16>
    %cst_10 = arith.constant dense<0.000000e+00> : vector<8x128xf32>
    %17 = tpu.matmul %15, %16, %cst_10 {dimension_numbers = #tpu.dot_dimension_numbers<[1], [0], [0], [1], [0, 0, 1, 1], [], []>} : vector<8x256xbf16>, vector<256x128xbf16>, vector<8x128xf32> -> vector<8x128xf32>
    %c0_11 = arith.constant 0 : index
    %c0_12 = arith.constant 0 : index
    %18 = vector.load %arg5[%c0_11, %c0_12] : memref<1x128xf32, #tpu.memory_space<vmem>>, vector<1x128xf32>
    %19 = vector.broadcast %18 : vector<1x128xf32> to vector<8x128xf32>
    %20 = arith.addf %17, %19 : vector<8x128xf32>
    %c0_13 = arith.constant 0 : index
    %c0_14 = arith.constant 0 : index
    %21 = vector.load %arg6[%c0_13, %c0_14] : memref<8x128xf32, #tpu.memory_space<vmem>>, vector<8x128xf32>
    tpu.vector_store %arg6[%c0_13, %c0_14], %20 {strides = array<i32>} : memref<8x128xf32, #tpu.memory_space<vmem>>, vector<8x128xf32>,
    return
  }
  func.func @transform_0(%arg0: i32) -> (i32, i32) {
    %c0_i32 = arith.constant 0 : i32
    %c0_i32_0 = arith.constant 0 : i32
    return %arg0, %c0_i32 : i32, i32
  }
  func.func @transform_1(%arg0: i32) -> (i32, i32) {
    %c0_i32 = arith.constant 0 : i32
    %c0_i32_0 = arith.constant 0 : i32
    %c0_i32_1 = arith.constant 0 : i32
    return %c0_i32, %c0_i32_0 : i32, i32
  }
  func.func @transform_2(%arg0: i32) -> (i32, i32) {
    %c0_i32 = arith.constant 0 : i32
    %c0_i32_0 = arith.constant 0 : i32
    %c0_i32_1 = arith.constant 0 : i32
    return %c0_i32, %c0_i32_0 : i32, i32
  }
  func.func @transform_3(%arg0: i32) -> (i32, i32) {
    %c0_i32 = arith.constant 0 : i32
    %c0_i32_0 = arith.constant 0 : i32
    %c0_i32_1 = arith.constant 0 : i32
    return %c0_i32, %c0_i32_0 : i32, i32
  }
  func.func @transform_4(%arg0: i32) -> (i32, i32) {
    %c0_i32 = arith.constant 0 : i32
    %c0_i32_0 = arith.constant 0 : i32
    %c0_i32_1 = arith.constant 0 : i32
    return %c0_i32, %c0_i32_0 : i32, i32
  }
  func.func @transform_5(%arg0: i32) -> (i32, i32) {
    %c0_i32 = arith.constant 0 : i32
    %c0_i32_0 = arith.constant 0 : i32
    return %arg0, %c0_i32 : i32, i32
  }
}

</mosaic_0001>

<llo_original>
// kernel: mlp_forward.1
$region0: #{mlp_forward.1}
  #allocation0 [shape = 'u32[]', space=smem, size = 0x4, offset = 0x4, fixed_abs, tag = 'smem constant byte address 0x4 - core index']
  #allocation1 [shape = 'u32[144,128]{1,0:T(1,128)}', space=vmem, size = 0x12000, scoped, tag = 'internal scratch']
  %s0 = inlined_call_operand.vmem [shape: f32[8,128], index: 0, kind: input, shape index: {}]
  %s1 = inlined_call_operand.vmem [shape: bf16[128,256], index: 1, kind: input, shape index: {}]
  %s2 = inlined_call_operand.vmem [shape: f32[1,256], index: 2, kind: input, shape index: {}]
  %s3 = inlined_call_operand.vmem [shape: bf16[256,128], index: 3, kind: input, shape index: {}]
  %s4 = inlined_call_operand.vmem [shape: f32[1,128], index: 4, kind: input, shape index: {}]
  %s5 = inlined_call_operand.vmem [shape: f32[8,128], index: 5, kind: output, shape index: {}]
  %s6 = sld [smem:[#allocation0]]
  $region30: #{mlp_forward.1} parent=0
    _
  %s8 = ssub.s32 1, %s6
  %s9 = scalar_select 0, %s8, %s6
  // Predicated region
  $region2: #{mlp_forward.1} parent=0 // pred_check
    _
  $region3: #{mlp_forward.1} parent=0 // pred_check_branch
    %11 = sbr.rel (0) target = $region5
  $region4: #{mlp_forward.1} parent=0 // pred_region
    _
  $region5: #{mlp_forward.1} parent=0 // pred_fallthru
    _
  // Predicated region
  $region6: #{mlp_forward.1} parent=0 // pred_check
    _
  $region7: #{mlp_forward.1} parent=0 // pred_check_branch
    %13 = sbr.rel (0) target = $region9
  $region8: #{mlp_forward.1} parent=0 // pred_region
    _
  $region9: #{mlp_forward.1} parent=0 // pred_fallthru
    _
  // Predicated region
  $region10: #{mlp_forward.1} parent=0 // pred_check
    _
  $region11: #{mlp_forward.1} parent=0 // pred_check_branch
    %15 = sbr.rel (0) target = $region13
  $region12: #{mlp_forward.1} parent=0 // pred_region
    _
  $region13: #{mlp_forward.1} parent=0 // pred_fallthru
    _
  // Predicated region
  $region14: #{mlp_forward.1} parent=0 // pred_check
    _
  $region15: #{mlp_forward.1} parent=0 // pred_check_branch
    %17 = sbr.rel (0) target = $region17
  $region16: #{mlp_forward.1} parent=0 // pred_region
    _
  $region17: #{mlp_forward.1} parent=0 // pred_fallthru
    _
  // Predicated region
  $region18: #{mlp_forward.1} parent=0 // pred_check
    _
  $region19: #{mlp_forward.1} parent=0 // pred_check_branch
    %19 = sbr.rel (0) target = $region21
  $region20: #{mlp_forward.1} parent=0 // pred_region
    _
  $region21: #{mlp_forward.1} parent=0 // pred_fallthru
    _
  %v21 = vld [vmem:[%s0] sm:$0xff]
  %v22 = vpack.c.bf16 %v21, %v21
  %v23 = vld [vmem:[%s1] sm:$0xff]
  %v24 = vld [vmem:[%s1 + $0x8] sm:$0xff]
  %v25 = vld [vmem:[%s1 + $0x10] sm:$0xff]
  %v26 = vld [vmem:[%s1 + $0x18] sm:$0xff]
  %v27 = vld [vmem:[%s1 + $0x20] sm:$0xff]
  %v28 = vld [vmem:[%s1 + $0x28] sm:$0xff]
  %v29 = vld [vmem:[%s1 + $0x30] sm:$0xff]
  %v30 = vld [vmem:[%s1 + $0x38] sm:$0xff]
  %v31 = vld [vmem:[%s1 + $0x40] sm:$0xff]
  %v32 = vld [vmem:[%s1 + $0x48] sm:$0xff]
  %v33 = vld [vmem:[%s1 + $0x50] sm:$0xff]
  %v34 = vld [vmem:[%s1 + $0x58] sm:$0xff]
  %v35 = vld [vmem:[%s1 + $0x60] sm:$0xff]
  %v36 = vld [vmem:[%s1 + $0x68] sm:$0xff]
  %v37 = vld [vmem:[%s1 + $0x70] sm:$0xff]
  %v38 = vld [vmem:[%s1 + $0x78] sm:$0xff]
  %v39 = vld [vmem:[%s2] sm:$0x3]
  %v41 = vlaneseq
  %v42 = vshrl.u32 %v41, 7
  %v43 = vsub.s32 0, %v42
  %v44 = vrot.slane %v39, %v43
  %v45 = vlaneseq
  %v46 = vshrl.u32 %v45, 7
  %v47 = vsub.s32 1, %v46
  %v48 = vrot.slane %v39, %v47
  %v67 = vunpack.c.l.b16 %v23
  %v68 = vunpack.c.h.b16 %v23
  %v69 = vunpack.c.l.b16 %v24
  %v70 = vunpack.c.h.b16 %v24
  %v71 = vunpack.c.l.b16 %v25
  %v72 = vunpack.c.h.b16 %v25
  %v73 = vunpack.c.l.b16 %v26
  %v74 = vunpack.c.h.b16 %v26
  %v75 = vunpack.c.l.b16 %v27
  %v76 = vunpack.c.h.b16 %v27
  %v77 = vunpack.c.l.b16 %v28
  %v78 = vunpack.c.h.b16 %v28
  %v79 = vunpack.c.l.b16 %v29
  %v80 = vunpack.c.h.b16 %v29
  %v81 = vunpack.c.l.b16 %v30
  %v82 = vunpack.c.h.b16 %v30
  %v83 = vunpack.c.l.b16 %v31
  %v84 = vunpack.c.h.b16 %v31
  %v85 = vunpack.c.l.b16 %v32
  %v86 = vunpack.c.h.b16 %v32
  %v87 = vunpack.c.l.b16 %v33
  %v88 = vunpack.c.h.b16 %v33
  %v89 = vunpack.c.l.b16 %v34
  %v90 = vunpack.c.h.b16 %v34
  %v91 = vunpack.c.l.b16 %v35
  %v92 = vunpack.c.h.b16 %v35
  %v93 = vunpack.c.l.b16 %v36
  %v94 = vunpack.c.h.b16 %v36
  %v95 = vunpack.c.l.b16 %v37
  %v96 = vunpack.c.h.b16 %v37
  %v97 = vunpack.c.l.b16 %v38
  %v98 = vunpack.c.h.b16 %v38
  %v99 = vpack.c.b16 %v69, %v67
  %v100 = vpack.c.b16 %v70, %v68
  %v101 = vpack.c.b16 %v73, %v71
  %v102 = vpack.c.b16 %v74, %v72
  %v103 = vpack.c.b16 %v77, %v75
  %v104 = vpack.c.b16 %v78, %v76
  %v105 = vpack.c.b16 %v81, %v79
  %v106 = vpack.c.b16 %v82, %v80
  %v107 = vpack.c.b16 %v85, %v83
  %v108 = vpack.c.b16 %v86, %v84
  %v109 = vpack.c.b16 %v89, %v87
  %v110 = vpack.c.b16 %v90, %v88
  %v111 = vpack.c.b16 %v93, %v91
  %v112 = vpack.c.b16 %v94, %v92
  %v113 = vpack.c.b16 %v97, %v95
  %v114 = vpack.c.b16 %v98, %v96
  %131 = vmatprep.subr.bf16.mxu0 %v100
  %132 = vmatpush1.bf16.msra.mxu0 %v99
  %133 = vmatprep.subr.bf16.mxu0 %v102
  %134 = vmatpush1.bf16.msra.mxu0 %v101
  %135 = vmatprep.subr.bf16.mxu0 %v104
  %136 = vmatpush1.bf16.msra.mxu0 %v103
  %137 = vmatprep.subr.bf16.mxu0 %v106
  %138 = vmatpush1.bf16.msra.mxu0 %v105
  %139 = vmatprep.subr.bf16.mxu0 %v108
  %140 = vmatpush1.bf16.msra.mxu0 %v107
  %141 = vmatprep.subr.bf16.mxu0 %v110
  %142 = vmatpush1.bf16.msra.mxu0 %v109
  %143 = vmatprep.subr.bf16.mxu0 %v112
  %144 = vmatpush1.bf16.msra.mxu0 %v111
  %145 = vmatprep.subr.bf16.mxu0 %v114
  %146 = vmatpush1.bf16.msra.mxu0 %v113
  %147 = vmatprep.subr.bf16.mxu0 0
  %148 = vmatpush1.bf16.msra.mxu0 0
  %149 = vmatprep.subr.bf16.mxu0 0
  %150 = vmatpush1.bf16.msra.mxu0 0
  %151 = vmatprep.subr.bf16.mxu0 0
  %152 = vmatpush1.bf16.msra.mxu0 0
  %153 = vmatprep.subr.bf16.mxu0 0
  %154 = vmatpush1.bf16.msra.mxu0 0
  %155 = vmatprep.subr.bf16.mxu0 0
  %156 = vmatpush1.bf16.msra.mxu0 0
  %157 = vmatprep.subr.bf16.mxu0 0
  %158 = vmatpush1.bf16.msra.mxu0 0
  %159 = vmatprep.subr.bf16.mxu0 0
  %160 = vmatpush1.bf16.msra.mxu0 0
  %161 = vmatprep.subr.bf16.mxu0 0
  %162 = vmatpush1.bf16.msra.mxu0 0
  %163 = vmatprep.mubr.bf16.mxu0 0
  %164 = vmatmul.mubr.bf16.gmra.mrb[0].mxu0 %v22
  %v165 = vpop.f32.mrb[0].mxu0
  %v166 = vadd.f32 %v44, %v165
  %v167 = vpop.f32.mrb[0].mxu0
  %v168 = vadd.f32 %v48, %v167
  %v169 = vpop.f32.mrb[0].mxu0
  %v170 = vpop.f32.mrb[0].mxu0
  %171 = vdwg.mxu0
  %vm172 = vcmp.gt.f32.partialorder %v166, 0.0
  %vm173 = vcmp.gt.f32.partialorder %v168, 0.0
  %v174 = vmin.f32 %v166, 0.0
  %v175 = vmin.f32 %v168, 0.0
  %v176 = vmul.f32 %v174, 1.442695
  %v177 = vpow.pop %v176
  %v178 = vmul.f32 %v175, 1.442695
  %v179 = vpow.pop %v178
  %v180 = vsub.f32 %v177, 1.0
  %v181 = vsub.f32 %v179, 1.0
  %v182 = vsel %vm172, %v166, %v180
  %v183 = vsel %vm173, %v168, %v181
  %v184 = vpack.c.bf16 %v182, %v182
  %v185 = vpack.c.bf16 %v183, %v183
  %v186 = vld [vmem:[%s3] sm:$0xf]
  %v187 = vld [vmem:[%s3 + $0x4] sm:$0xf]
  %v188 = vld [vmem:[%s3 + $0x8] sm:$0xf]
  %v189 = vld [vmem:[%s3 + $0xc] sm:$0xf]
  %v190 = vld [vmem:[%s3 + $0x10] sm:$0xf]
  %v191 = vld [vmem:[%s3 + $0x14] sm:$0xf]
  %v192 = vld [vmem:[%s3 + $0x18] sm:$0xf]
  %v193 = vld [vmem:[%s3 + $0x1c] sm:$0xf]
  %v194 = vld [vmem:[%s3 + $0x20] sm:$0xf]
  %v195 = vld [vmem:[%s3 + $0x24] sm:$0xf]
  %v196 = vld [vmem:[%s3 + $0x28] sm:$0xf]
  %v197 = vld [vmem:[%s3 + $0x2c] sm:$0xf]
  %v198 = vld [vmem:[%s3 + $0x30] sm:$0xf]
  %v199 = vld [vmem:[%s3 + $0x34] sm:$0xf]
  %v200 = vld [vmem:[%s3 + $0x38] sm:$0xf]
  %v201 = vld [vmem:[%s3 + $0x3c] sm:$0xf]
  %v202 = vld [vmem:[%s3 + $0x40] sm:$0xf]
  %v203 = vld [vmem:[%s3 + $0x44] sm:$0xf]
  %v204 = vld [vmem:[%s3 + $0x48] sm:$0xf]
  %v205 = vld [vmem:[%s3 + $0x4c] sm:$0xf]
  %v206 = vld [vmem:[%s3 + $0x50] sm:$0xf]
  %v207 = vld [vmem:[%s3 + $0x54] sm:$0xf]
  %v208 = vld [vmem:[%s3 + $0x58] sm:$0xf]
  %v209 = vld [vmem:[%s3 + $0x5c] sm:$0xf]
  %v210 = vld [vmem:[%s3 + $0x60] sm:$0xf]
  %v211 = vld [vmem:[%s3 + $0x64] sm:$0xf]
  %v212 = vld [vmem:[%s3 + $0x68] sm:$0xf]
  %v213 = vld [vmem:[%s3 + $0x6c] sm:$0xf]
  %v214 = vld [vmem:[%s3 + $0x70] sm:$0xf]
  %v215 = vld [vmem:[%s3 + $0x74] sm:$0xf]
  %v216 = vld [vmem:[%s3 + $0x78] sm:$0xf]
  %v217 = vld [vmem:[%s3 + $0x7c] sm:$0xf]
  %v218 = vld [vmem:[%s4] sm:$0x1]
  %v220 = vlaneseq
  %v221 = vshrl.u32 %v220, 7
  %v222 = vsub.s32 0, %v221
  %v223 = vrot.slane %v218, %v222
  %v257 = vunpack.c.l.b16 %v186
  %v258 = vunpack.c.l.b16 %v187
  %v259 = vunpack.c.l.b16 %v188
  %v260 = vunpack.c.l.b16 %v189
  %v261 = vunpack.c.l.b16 %v190
  %v262 = vunpack.c.l.b16 %v191
  %v263 = vunpack.c.l.b16 %v192
  %v264 = vunpack.c.l.b16 %v193
  %v265 = vunpack.c.l.b16 %v194
  %v266 = vunpack.c.l.b16 %v195
  %v267 = vunpack.c.l.b16 %v196
  %v268 = vunpack.c.l.b16 %v197
  %v269 = vunpack.c.l.b16 %v198
  %v270 = vunpack.c.l.b16 %v199
  %v271 = vunpack.c.l.b16 %v200
  %v272 = vunpack.c.l.b16 %v201
  %v273 = vunpack.c.l.b16 %v202
  %v274 = vunpack.c.l.b16 %v203
  %v275 = vunpack.c.l.b16 %v204
  %v276 = vunpack.c.l.b16 %v205
  %v277 = vunpack.c.l.b16 %v206
  %v278 = vunpack.c.l.b16 %v207
  %v279 = vunpack.c.l.b16 %v208
  %v280 = vunpack.c.l.b16 %v209
  %v281 = vunpack.c.l.b16 %v210
  %v282 = vunpack.c.l.b16 %v211
  %v283 = vunpack.c.l.b16 %v212
  %v284 = vunpack.c.l.b16 %v213
  %v285 = vunpack.c.l.b16 %v214
  %v286 = vunpack.c.l.b16 %v215
  %v287 = vunpack.c.l.b16 %v216
  %v288 = vunpack.c.l.b16 %v217
  %v289 = vpack.c.b16 %v258, %v257
  %v290 = vpack.c.b16 %v260, %v259
  %v291 = vpack.c.b16 %v262, %v261
  %v292 = vpack.c.b16 %v264, %v263
  %v293 = vpack.c.b16 %v266, %v265
  %v294 = vpack.c.b16 %v268, %v267
  %v295 = vpack.c.b16 %v270, %v269
  %v296 = vpack.c.b16 %v272, %v271
  %v297 = vpack.c.b16 %v274, %v273
  %v298 = vpack.c.b16 %v276, %v275
  %v299 = vpack.c.b16 %v278, %v277
  %v300 = vpack.c.b16 %v280, %v279
  %v301 = vpack.c.b16 %v282, %v281
  %v302 = vpack.c.b16 %v284, %v283
  %v303 = vpack.c.b16 %v286, %v285
  %v304 = vpack.c.b16 %v288, %v287
  %321 = vmatprep.subr.bf16.mxu0 0
  %322 = vmatpush1.bf16.msra.mxu0 %v289
  %323 = vmatprep.subr.bf16.mxu0 0
  %324 = vmatpush1.bf16.msra.mxu0 %v290
  %325 = vmatprep.subr.bf16.mxu0 0
  %326 = vmatpush1.bf16.msra.mxu0 %v291
  %327 = vmatprep.subr.bf16.mxu0 0
  %328 = vmatpush1.bf16.msra.mxu0 %v292
  %329 = vmatprep.subr.bf16.mxu0 0
  %330 = vmatpush1.bf16.msra.mxu0 %v293
  %331 = vmatprep.subr.bf16.mxu0 0
  %332 = vmatpush1.bf16.msra.mxu0 %v294
  %333 = vmatprep.subr.bf16.mxu0 0
  %334 = vmatpush1.bf16.msra.mxu0 %v295
  %335 = vmatprep.subr.bf16.mxu0 0
  %336 = vmatpush1.bf16.msra.mxu0 %v296
  %337 = vmatprep.subr.bf16.mxu0 0
  %338 = vmatpush1.bf16.msra.mxu0 %v297
  %339 = vmatprep.subr.bf16.mxu0 0
  %340 = vmatpush1.bf16.msra.mxu0 %v298
  %341 = vmatprep.subr.bf16.mxu0 0
  %342 = vmatpush1.bf16.msra.mxu0 %v299
  %343 = vmatprep.subr.bf16.mxu0 0
  %344 = vmatpush1.bf16.msra.mxu0 %v300
  %345 = vmatprep.subr.bf16.mxu0 0
  %346 = vmatpush1.bf16.msra.mxu0 %v301
  %347 = vmatprep.subr.bf16.mxu0 0
  %348 = vmatpush1.bf16.msra.mxu0 %v302
  %349 = vmatprep.subr.bf16.mxu0 0
  %350 = vmatpush1.bf16.msra.mxu0 %v303
  %351 = vmatprep.subr.bf16.mxu0 0
  %352 = vmatpush1.bf16.msra.mxu0 %v304
  %353 = vmatprep.mubr.bf16.mxu0 %v185
  %354 = vmatmul.mubr.bf16.gmra.mrb[0].mxu0 %v184
  %v355 = vpop.f32.mrb[0].mxu0
  %v356 = vadd.f32 %v223, %v355
  %v357 = vpop.f32.mrb[0].mxu0
  %v358 = vpop.f32.mrb[0].mxu0
  %v359 = vpop.f32.mrb[0].mxu0
  %360 = vdwg.mxu0
  %361 = vst [vmem:[%s5] sm:$0xff] %v356
  // Predicated region
  $region22: #{mlp_forward.1} parent=0 // pred_check
    _
  $region23: #{mlp_forward.1} parent=0 // pred_check_branch
    %363 = sbr.rel (0) target = $region25
  $region24: #{mlp_forward.1} parent=0 // pred_region
    _
  $region25: #{mlp_forward.1} parent=0 // pred_fallthru
    _
  // Predicated region
  $region26: #{mlp_forward.1} parent=0 // pred_check
    _
  $region27: #{mlp_forward.1} parent=0 // pred_check_branch
    %365 = sbr.rel (0) target = $region29
  $region28: #{mlp_forward.1} parent=0 // pred_region
    _
  $region29: #{mlp_forward.1} parent=0 // pred_fallthru
    _

</llo_original>
